<compile_context>
chip_gen: v7x
topology: tpu7x:2x2x1
jax: 0.10.0
libtpu: 0.0.40
codegen_flags: <defaults>
</compile_context>

<pallas_src>
import functools
import math

import jax
import jax.numpy as jnp
from jax.experimental import pallas as pl
from jax.experimental.pallas import tpu as pltpu


def _round_up(a, b):
    return ((a + b - 1) // b) * b


def _pick_tile(total, cap, align=8):
    """Largest multiple-of-`align` divisor of `total` not exceeding `cap`.

    Falls back to `total` itself (a full-extent block is always legal)."""
    cap = max(align, min(cap, total))
    t = (cap // align) * align
    while t >= align:
        if total % t == 0:
            return t
        t -= align
    return total


def _maybe_vmem_limit(nbytes):
    # Raise the scoped-VMEM limit only when the working set may exceed the most
    # conservative default (16 MiB on v5e); cap at v7x's 64 MiB physical VMEM.
    if nbytes <= (14 << 20):
        return None
    return int(min(nbytes, 64 << 20))


# --------------------------------------------------------------------------- QKV projection
def _qkv_proj_kernel(x_ref, wq_ref, wk_ref, wv_ref, bq_ref, bk_ref, bv_ref,
                     q_ref, k_ref, v_ref):
    # x_ref: (tm, H) bf16; w*_ref: (H, H) bf16 (resident); b*_ref: (1, H) f32
    # q/k/v_ref: (tm, H) bf16 — written directly (no post-kernel slicing).
    x = x_ref[...]
    q_ref[...] = (jnp.dot(x, wq_ref[...], preferred_element_type=jnp.float32)
                  + bq_ref[...]).astype(q_ref.dtype)
    k_ref[...] = (jnp.dot(x, wk_ref[...], preferred_element_type=jnp.float32)
                  + bk_ref[...]).astype(k_ref.dtype)
    v_ref[...] = (jnp.dot(x, wv_ref[...], preferred_element_type=jnp.float32)
                  + bv_ref[...]).astype(v_ref.dtype)


# --------------------------------------------------------------------------- attention
def _attn_kernel(q_ref, k_ref, v_ref, o_ref, *, scale, seq_len, need_mask):
    # q_ref: (t_q, H) bf16; k_ref/v_ref: (S_pad, H) bf16, resident per batch (constant block
    # index across the q tiles of one batch); o_ref: (t_q, H).
    s = jax.lax.dot_general(
        q_ref[...], k_ref[...],
        dimension_numbers=(((1,), (1,)), ((), ())),     # q @ k^T on the MXU
        preferred_element_type=jnp.float32) * scale      # (t_q, S_pad) f32

    if need_mask:  # static flag: only when S was padded up to a multiple of 8
        col = jax.lax.broadcasted_iota(jnp.int32, s.shape, 1)
        s = jnp.where(col < seq_len, s, jnp.float32(-1e30))

    m = jnp.max(s, axis=-1, keepdims=True)
    p = jnp.exp(s - m)
    l = jnp.sum(p, axis=-1, keepdims=True)
    ctx = jnp.dot(p.astype(v_ref.dtype), v_ref[...],
                  preferred_element_type=jnp.float32)    # (t_q, H) f32
    o_ref[...] = (ctx * pl.reciprocal(l, approx=True)).astype(o_ref.dtype)


# --------------------------------------------------------------------------- wrapper
def bert_self_attention(x, wq, bq, wk, bk, wv, bv, *, row_tile=512, seq_tile=512):
    """x: (B, S, H); wq/wk/wv: (H, H) (already transposed); bq/bk/bv: (H,). Returns (B, S, H)."""
    B, S, H = x.shape
    scale = 1.0 / math.sqrt(H)

    # ---- tiling: everything padded only to a multiple of 8, tiles are exact divisors ----
    S_pad = _round_up(S, 8)
    t_q = _pick_tile(S_pad, seq_tile)      # q tile, divides S_pad, multiple of 8
    n_q = S_pad // t_q
    M_p = B * S_pad                        # flattened rows for the projection
    tm = _pick_tile(M_p, row_tile)         # row tile, divides M_p -> no [:M_p] copy

    # ---- inputs: bf16 MXU operands, f32 accumulation ----
    x_p = x if S_pad == S else jnp.pad(x, ((0, 0), (0, S_pad - S), (0, 0)))
    x_bf = x_p.reshape(M_p, H).astype(jnp.bfloat16)
    wq_bf = wq.astype(jnp.bfloat16)
    wk_bf = wk.astype(jnp.bfloat16)
    wv_bf = wv.astype(jnp.bfloat16)
    bq2 = bq.astype(jnp.float32).reshape(1, H)
    bk2 = bk.astype(jnp.float32).reshape(1, H)
    bv2 = bv.astype(jnp.float32).reshape(1, H)

    # ---- kernel 1: fused QKV projection, three direct outputs ----
    qkv_vmem = (2 * tm * H * 2            # x tiles (double-buffered)
                + 3 * 2 * H * H * 2       # resident weights (double-buffered by default)
                + 3 * 2 * H * 4           # biases
                + 3 * 2 * tm * H * 2      # q/k/v output tiles
                + 3 * tm * H * 4)         # f32 accumulators
    q, k, v = pl.pallas_call(
        _qkv_proj_kernel,
        out_shape=(jax.ShapeDtypeStruct((M_p, H), jnp.bfloat16),
                   jax.ShapeDtypeStruct((M_p, H), jnp.bfloat16),
                   jax.ShapeDtypeStruct((M_p, H), jnp.bfloat16)),
        grid_spec=pltpu.PrefetchScalarGridSpec(
            num_scalar_prefetch=0,
            grid=(M_p // tm,),
            in_specs=[
                pl.BlockSpec((tm, H), lambda i: (i, 0)),   # activations, tiled over rows
                pl.BlockSpec((H, H), lambda i: (0, 0)),    # Wq (resident)
                pl.BlockSpec((H, H), lambda i: (0, 0)),    # Wk (resident)
                pl.BlockSpec((H, H), lambda i: (0, 0)),    # Wv (resident)
                pl.BlockSpec((1, H), lambda i: (0, 0)),    # bq
                pl.BlockSpec((1, H), lambda i: (0, 0)),    # bk
                pl.BlockSpec((1, H), lambda i: (0, 0)),    # bv
            ],
            out_specs=[
                pl.BlockSpec((tm, H), lambda i: (i, 0)),
                pl.BlockSpec((tm, H), lambda i: (i, 0)),
                pl.BlockSpec((tm, H), lambda i: (i, 0)),
            ],
        ),
        compiler_params=pltpu.CompilerParams(
            dimension_semantics=("parallel",),
            vmem_limit_bytes=_maybe_vmem_limit(qkv_vmem)),
        cost_estimate=pl.CostEstimate(
            flops=2 * M_p * H * 3 * H,
            transcendentals=0,
            bytes_accessed=M_p * H * 2 + 3 * H * H * 2 + 3 * H * 4 + 3 * M_p * H * 2),
    )(x_bf, wq_bf, wk_bf, wv_bf, bq2, bk2, bv2)

    # ---- kernel 2: attention with per-batch resident K/V (collapsed (B, qi) grid) ----
    out_bytes = jnp.dtype(x.dtype).itemsize
    attn_vmem = (2 * t_q * H * 2                 # q tiles
                 + 2 * 2 * S_pad * H * 2         # resident K and V (double-buffered)
                 + 2 * t_q * H * out_bytes       # output tiles
                 + t_q * S_pad * (4 + 2))        # f32 scores + bf16 probs
    attn_kernel = functools.partial(
        _attn_kernel, scale=scale, seq_len=S, need_mask=(S_pad != S))

    ctx = pl.pallas_call(
        attn_kernel,
        out_shape=jax.ShapeDtypeStruct((M_p, H), x.dtype),
        grid_spec=pltpu.PrefetchScalarGridSpec(
            num_scalar_prefetch=0,
            grid=(B * n_q,),
            in_specs=[
                pl.BlockSpec((t_q, H), lambda i: (i, 0)),           # q tile
                pl.BlockSpec((S_pad, H), lambda i: (i // n_q, 0)),  # K, resident per batch
                pl.BlockSpec((S_pad, H), lambda i: (i // n_q, 0)),  # V, resident per batch
            ],
            out_specs=pl.BlockSpec((t_q, H), lambda i: (i, 0)),
        ),
        compiler_params=pltpu.CompilerParams(
            dimension_semantics=("parallel",),
            vmem_limit_bytes=_maybe_vmem_limit(attn_vmem)),
        cost_estimate=pl.CostEstimate(
            flops=4 * B * S_pad * S_pad * H,
            transcendentals=B * S_pad * S_pad,
            bytes_accessed=3 * B * S_pad * H * 2 + B * S_pad * H * out_bytes),
    )(q, k, v)

    out = ctx.reshape(B, S_pad, H)
    return out if S_pad == S else out[:, :S, :]


# --------------------------------------------------------------------------- reference
def _reference(x, wq, bq, wk, bk, wv, bv):
    q = jnp.einsum("bsh,hd->bsd", x, wq) + bq
    k = jnp.einsum("bsh,hd->bsd", x, wk) + bk
    v = jnp.einsum("bsh,hd->bsd", x, wv) + bv
    s = jnp.einsum("bqd,bkd->bqk", q, k) / math.sqrt(x.shape[-1])
    p = jax.nn.softmax(s, axis=-1)
    return jnp.einsum("bqk,bkd->bqd", p, v)


if __name__ == "__main__":
    # small config: all_head_size (hidden) = 32, batch = 2, seq = 8
    B, S, H = 2, 8, 32

    key = jax.random.PRNGKey(0)
    kx, kwq, kwk, kwv, kbq, kbk, kbv = jax.random.split(key, 7)

    x = jax.random.normal(kx, (B, S, H), dtype=jnp.float32)
    bound = 1.0 / math.sqrt(H)   # nn.Linear default init range
    wq = jax.random.uniform(kwq, (H, H), jnp.float32, -bound, bound)
    wk = jax.random.uniform(kwk, (H, H), jnp.float32, -bound, bound)
    wv = jax.random.uniform(kwv, (H, H), jnp.float32, -bound, bound)
    bq = jax.random.uniform(kbq, (H,), jnp.float32, -bound, bound)
    bk = jax.random.uniform(kbk, (H,), jnp.float32, -bound, bound)
    bv = jax.random.uniform(kbv, (H,), jnp.float32, -bound, bound)

    y = bert_self_attention(x, wq, bq, wk, bk, wv, bv)
    y = jax.block_until_ready(y)

    y_ref = _reference(x, wq, bq, wk, bk, wv, bv)
    assert y.shape == (B, S, H)
    # bf16 MXU operands with f32 accumulation -> loosened tolerance vs f32 reference
    assert jnp.allclose(y, y_ref, atol=2e-2, rtol=2e-2), float(jnp.max(jnp.abs(y - y_ref)))

    print("KERNEL_OK")
</pallas_src>

<mosaic_0001>
module attributes {stable_mosaic.version = 11 : i64} {
  func.func @_qkv_proj_kernel(%arg0: i32, %arg1: memref<16x32xbf16, #tpu.memory_space<vmem>>, %arg2: memref<32x32xbf16, #tpu.memory_space<vmem>>, %arg3: memref<32x32xbf16, #tpu.memory_space<vmem>>, %arg4: memref<32x32xbf16, #tpu.memory_space<vmem>>, %arg5: memref<1x32xf32, #tpu.memory_space<vmem>>, %arg6: memref<1x32xf32, #tpu.memory_space<vmem>>, %arg7: memref<1x32xf32, #tpu.memory_space<vmem>>, %arg8: memref<16x32xbf16, #tpu.memory_space<vmem>>, %arg9: memref<16x32xbf16, #tpu.memory_space<vmem>>, %arg10: memref<16x32xbf16, #tpu.memory_space<vmem>>) attributes {dimension_semantics = [#tpu.dimension_semantics<parallel>], iteration_bounds = array<i64: 1>, scalar_prefetch = 0 : i64, scratch_operands = 0 : i64, tpu.core_type = #tpu.core_type<tc>, window_params = [{transform_indices = @transform_0, window_bounds = array<i64: 16, 32>}, {pipeline_mode = #tpu.pipeline_mode<synchronous>, transform_indices = @transform_1, window_bounds = array<i64: 32, 32>}, {pipeline_mode = #tpu.pipeline_mode<synchronous>, transform_indices = @transform_2, window_bounds = array<i64: 32, 32>}, {pipeline_mode = #tpu.pipeline_mode<synchronous>, transform_indices = @transform_3, window_bounds = array<i64: 32, 32>}, {pipeline_mode = #tpu.pipeline_mode<synchronous>, transform_indices = @transform_4, window_bounds = array<i64: 1, 32>}, {pipeline_mode = #tpu.pipeline_mode<synchronous>, transform_indices = @transform_5, window_bounds = array<i64: 1, 32>}, {pipeline_mode = #tpu.pipeline_mode<synchronous>, transform_indices = @transform_6, window_bounds = array<i64: 1, 32>}, {transform_indices = @transform_7, window_bounds = array<i64: 16, 32>}, {transform_indices = @transform_8, window_bounds = array<i64: 16, 32>}, {transform_indices = @transform_9, window_bounds = array<i64: 16, 32>}]} {
    %c0 = arith.constant 0 : index
    %c0_0 = arith.constant 0 : index
    %0 = vector.load %arg1[%c0, %c0_0] : memref<16x32xbf16, #tpu.memory_space<vmem>>, vector<16x32xbf16>
    %c0_1 = arith.constant 0 : index
    %c0_2 = arith.constant 0 : index
    %1 = vector.load %arg2[%c0_1, %c0_2] : memref<32x32xbf16, #tpu.memory_space<vmem>>, vector<32x32xbf16>
    %cst = arith.constant dense<0.000000e+00> : vector<16x32xf32>
    %2 = tpu.matmul %0, %1, %cst {dimension_numbers = #tpu.dot_dimension_numbers<[1], [0], [0], [1], [0, 0, 1, 1], [], []>} : vector<16x32xbf16>, vector<32x32xbf16>, vector<16x32xf32> -> vector<16x32xf32>
    %c0_3 = arith.constant 0 : index
    %c0_4 = arith.constant 0 : index
    %3 = vector.load %arg5[%c0_3, %c0_4] : memref<1x32xf32, #tpu.memory_space<vmem>>, vector<1x32xf32>
    %4 = vector.broadcast %3 : vector<1x32xf32> to vector<16x32xf32>
    %5 = arith.addf %2, %4 : vector<16x32xf32>
    %6 = arith.truncf %5 : vector<16x32xf32> to vector<16x32xbf16>
    %c0_5 = arith.constant 0 : index
    %c0_6 = arith.constant 0 : index
    %7 = vector.load %arg8[%c0_5, %c0_6] : memref<16x32xbf16, #tpu.memory_space<vmem>>, vector<16x32xbf16>
    tpu.vector_store %arg8[%c0_5, %c0_6], %6 {strides = array<i32>} : memref<16x32xbf16, #tpu.memory_space<vmem>>, vector<16x32xbf16>,
    %c0_7 = arith.constant 0 : index
    %c0_8 = arith.constant 0 : index
    %8 = vector.load %arg3[%c0_7, %c0_8] : memref<32x32xbf16, #tpu.memory_space<vmem>>, vector<32x32xbf16>
    %cst_9 = arith.constant dense<0.000000e+00> : vector<16x32xf32>
    %9 = tpu.matmul %0, %8, %cst_9 {dimension_numbers = #tpu.dot_dimension_numbers<[1], [0], [0], [1], [0, 0, 1, 1], [], []>} : vector<16x32xbf16>, vector<32x32xbf16>, vector<16x32xf32> -> vector<16x32xf32>
    %c0_10 = arith.constant 0 : index
    %c0_11 = arith.constant 0 : index
    %10 = vector.load %arg6[%c0_10, %c0_11] : memref<1x32xf32, #tpu.memory_space<vmem>>, vector<1x32xf32>
    %11 = vector.broadcast %10 : vector<1x32xf32> to vector<16x32xf32>
    %12 = arith.addf %9, %11 : vector<16x32xf32>
    %13 = arith.truncf %12 : vector<16x32xf32> to vector<16x32xbf16>
    %c0_12 = arith.constant 0 : index
    %c0_13 = arith.constant 0 : index
    %14 = vector.load %arg9[%c0_12, %c0_13] : memref<16x32xbf16, #tpu.memory_space<vmem>>, vector<16x32xbf16>
    tpu.vector_store %arg9[%c0_12, %c0_13], %13 {strides = array<i32>} : memref<16x32xbf16, #tpu.memory_space<vmem>>, vector<16x32xbf16>,
    %c0_14 = arith.constant 0 : index
    %c0_15 = arith.constant 0 : index
    %15 = vector.load %arg4[%c0_14, %c0_15] : memref<32x32xbf16, #tpu.memory_space<vmem>>, vector<32x32xbf16>
    %cst_16 = arith.constant dense<0.000000e+00> : vector<16x32xf32>
    %16 = tpu.matmul %0, %15, %cst_16 {dimension_numbers = #tpu.dot_dimension_numbers<[1], [0], [0], [1], [0, 0, 1, 1], [], []>} : vector<16x32xbf16>, vector<32x32xbf16>, vector<16x32xf32> -> vector<16x32xf32>
    %c0_17 = arith.constant 0 : index
    %c0_18 = arith.constant 0 : index
    %17 = vector.load %arg7[%c0_17, %c0_18] : memref<1x32xf32, #tpu.memory_space<vmem>>, vector<1x32xf32>
    %18 = vector.broadcast %17 : vector<1x32xf32> to vector<16x32xf32>
    %19 = arith.addf %16, %18 : vector<16x32xf32>
    %20 = arith.truncf %19 : vector<16x32xf32> to vector<16x32xbf16>
    %c0_19 = arith.constant 0 : index
    %c0_20 = arith.constant 0 : index
    %21 = vector.load %arg10[%c0_19, %c0_20] : memref<16x32xbf16, #tpu.memory_space<vmem>>, vector<16x32xbf16>
    tpu.vector_store %arg10[%c0_19, %c0_20], %20 {strides = array<i32>} : memref<16x32xbf16, #tpu.memory_space<vmem>>, vector<16x32xbf16>,
    return
  }
  func.func @transform_0(%arg0: i32) -> (i32, i32) {
    %c0_i32 = arith.constant 0 : i32
    %c0_i32_0 = arith.constant 0 : i32
    return %arg0, %c0_i32 : i32, i32
  }
  func.func @transform_1(%arg0: i32) -> (i32, i32) {
    %c0_i32 = arith.constant 0 : i32
    %c0_i32_0 = arith.constant 0 : i32
    %c0_i32_1 = arith.constant 0 : i32
    return %c0_i32, %c0_i32_0 : i32, i32
  }
  func.func @transform_2(%arg0: i32) -> (i32, i32) {
    %c0_i32 = arith.constant 0 : i32
    %c0_i32_0 = arith.constant 0 : i32
    %c0_i32_1 = arith.constant 0 : i32
    return %c0_i32, %c0_i32_0 : i32, i32
  }
  func.func @transform_3(%arg0: i32) -> (i32, i32) {
    %c0_i32 = arith.constant 0 : i32
    %c0_i32_0 = arith.constant 0 : i32
    %c0_i32_1 = arith.constant 0 : i32
    return %c0_i32, %c0_i32_0 : i32, i32
  }
  func.func @transform_4(%arg0: i32) -> (i32, i32) {
    %c0_i32 = arith.constant 0 : i32
    %c0_i32_0 = arith.constant 0 : i32
    %c0_i32_1 = arith.constant 0 : i32
    return %c0_i32, %c0_i32_0 : i32, i32
  }
  func.func @transform_5(%arg0: i32) -> (i32, i32) {
    %c0_i32 = arith.constant 0 : i32
    %c0_i32_0 = arith.constant 0 : i32
    %c0_i32_1 = arith.constant 0 : i32
    return %c0_i32, %c0_i32_0 : i32, i32
  }
  func.func @transform_6(%arg0: i32) -> (i32, i32) {
    %c0_i32 = arith.constant 0 : i32
    %c0_i32_0 = arith.constant 0 : i32
    %c0_i32_1 = arith.constant 0 : i32
    return %c0_i32, %c0_i32_0 : i32, i32
  }
  func.func @transform_7(%arg0: i32) -> (i32, i32) {
    %c0_i32 = arith.constant 0 : i32
    %c0_i32_0 = arith.constant 0 : i32
    return %arg0, %c0_i32 : i32, i32
  }
  func.func @transform_8(%arg0: i32) -> (i32, i32) {
    %c0_i32 = arith.constant 0 : i32
    %c0_i32_0 = arith.constant 0 : i32
    return %arg0, %c0_i32 : i32, i32
  }
  func.func @transform_9(%arg0: i32) -> (i32, i32) {
    %c0_i32 = arith.constant 0 : i32
    %c0_i32_0 = arith.constant 0 : i32
    return %arg0, %c0_i32 : i32, i32
  }
}

</mosaic_0001>

<llo_original>
// kernel: tpu_custom_call.1
$region0: #{tpu_custom_call.1}
  #allocation0 [shape = 'u32[]', space=smem, size = 0x4, offset = 0x4, fixed_abs, tag = 'smem constant byte address 0x4 - core index']
  #allocation1 [shape = 'u32[144,128]{1,0:T(1,128)}', space=vmem, size = 0x12000, scoped, tag = 'internal scratch']
  %s0 = inlined_call_operand.hbm [shape: bf16[16,32], index: 0, kind: input, shape index: {}]
  %s1 = inlined_call_operand.hbm [shape: bf16[32,32], index: 1, kind: input, shape index: {}]
  %s2 = inlined_call_operand.hbm [shape: bf16[32,32], index: 2, kind: input, shape index: {}]
  %s3 = inlined_call_operand.hbm [shape: bf16[32,32], index: 3, kind: input, shape index: {}]
  %s4 = inlined_call_operand.vmem [shape: f32[1,32], index: 4, kind: input, shape index: {}]
  %s5 = inlined_call_operand.vmem [shape: f32[1,32], index: 5, kind: input, shape index: {}]
  %s6 = inlined_call_operand.vmem [shape: f32[1,32], index: 6, kind: input, shape index: {}]
  %s7 = inlined_call_operand.hbm [shape: bf16[16,32], index: 7, kind: output, shape index: {0}]
  %s8 = inlined_call_operand.hbm [shape: bf16[16,32], index: 8, kind: output, shape index: {1}]
  %s9 = inlined_call_operand.hbm [shape: bf16[16,32], index: 9, kind: output, shape index: {2}]
  %10 = xla_tuple %s7, %s8, %s9
  %s11 = sld [smem:[#allocation0]]
  $region70: #{tpu_custom_call.1} parent=0
    _
  %s13 = ssub.s32 1, %s11
  %s14 = scalar_select 0, %s13, %s11
  $region1: #{tpu_custom_call.1} parent=0
    #allocation2 [shape = 'u8[4096]{0}', space=vmem, size = 0x1000, scoped, tag = 'input window, operand 0, single buffered']
    #allocation3 [shape = 's32[1]{0}', space=sflag, size = 0x4, scoped, tag = 'scoped memory for tpu_custom_call.1']
    #allocation4 [shape = 's32[1]{0}', space=sflag, size = 0x4, scoped, tag = 'scoped memory for tpu_custom_call.1']
    #allocation5 [shape = 'u8[8192]{0}', space=vmem, size = 0x2000, scoped, tag = 'input window, operand 1, single buffered']
    #allocation6 [shape = 's32[1]{0}', space=sflag, size = 0x4, scoped, tag = 'scoped memory for tpu_custom_call.1']
    #allocation7 [shape = 'u8[8192]{0}', space=vmem, size = 0x2000, scoped, tag = 'input window, operand 2, single buffered']
    #allocation8 [shape = 'u8[8192]{0}', space=vmem, size = 0x2000, scoped, tag = 'input window, operand 3, single buffered']
    #allocation9 [shape = 's32[1]{0}', space=sflag, size = 0x4, scoped, tag = 'scoped memory for tpu_custom_call.1']
    #allocation10 [shape = 'u8[4096]{0}', space=vmem, size = 0x1000, scoped, tag = 'output window, operand 0, single buffered']
    #allocation11 [shape = 'u8[4096]{0}', space=vmem, size = 0x1000, scoped, tag = 'output window, operand 1, single buffered']
    #allocation12 [shape = 's32[1]{0}', space=sflag, size = 0x4, scoped, tag = 'scoped memory for tpu_custom_call.1']
    #allocation13 [shape = 'u8[4096]{0}', space=vmem, size = 0x1000, scoped, tag = 'output window, operand 2, single buffered']
    %15 = vsyncpa [#allocation3], 0
    %16 = vsyncpa [#allocation6], 0
    %17 = vsyncpa [#allocation9], 0
    %18 = vsyncpa [#allocation4], 0
    %19 = vsyncpa [#allocation12], 0
    // Predicated region
    $region2: #{tpu_custom_call.1} parent=1 // pred_check
      _
    $region3: #{tpu_custom_call.1} parent=1 // pred_check_branch
      %21 = sbr.rel (0) target = $region5
    $region4: #{tpu_custom_call.1} parent=1 // pred_region
      %s23 = ssub.s32 128, 128
      %24 = vsyncadd [#allocation3], %s23
      %s25 = sshll.u32 [#allocation2], 4
      %s26 = int_to_ptr.vmem [resolvable:$true] %s25
      %31 = dma.hbm_to_vmem [thread:$0]  %s0, 128, %s26, [#allocation3], 64, 64, 4
    $region5: #{tpu_custom_call.1} parent=1 // pred_fallthru
      _
    // Predicated region
    $region6: #{tpu_custom_call.1} parent=1 // pred_check
      _
    $region7: #{tpu_custom_call.1} parent=1 // pred_check_branch
      %33 = sbr.rel (0) target = $region9
    $region8: #{tpu_custom_call.1} parent=1 // pred_region
      %s35 = ssub.s32 256, 256
      %36 = vsyncadd [#allocation6], %s35
      %s37 = sshll.u32 [#allocation5], 4
      %s38 = int_to_ptr.vmem [resolvable:$true] %s37
      %43 = dma.hbm_to_vmem [thread:$0]  %s1, 256, %s38, [#allocation6], 64, 64, 4
    $region9: #{tpu_custom_call.1} parent=1 // pred_fallthru
      _
    // Predicated region
    $region10: #{tpu_custom_call.1} parent=1 // pred_check
      _
    $region11: #{tpu_custom_call.1} parent=1 // pred_check_branch
      %45 = sbr.rel (0) target = $region13
    $region12: #{tpu_custom_call.1} parent=1 // pred_region
      %s47 = ssub.s32 256, 256
      %48 = vsyncadd [#allocation6], %s47
      %s49 = sshll.u32 [#allocation7], 4
      %s50 = int_to_ptr.vmem [resolvable:$true] %s49
      %55 = dma.hbm_to_vmem [thread:$0]  %s2, 256, %s50, [#allocation6], 64, 64, 4
    $region13: #{tpu_custom_call.1} parent=1 // pred_fallthru
      _
    // Predicated region
    $region14: #{tpu_custom_call.1} parent=1 // pred_check
      _
    $region15: #{tpu_custom_call.1} parent=1 // pred_check_branch
      %57 = sbr.rel (0) target = $region17
    $region16: #{tpu_custom_call.1} parent=1 // pred_region
      %s59 = ssub.s32 256, 256
      %60 = vsyncadd [#allocation9], %s59
      %s61 = sshll.u32 [#allocation8], 4
      %s62 = int_to_ptr.vmem [resolvable:$true] %s61
      %67 = dma.hbm_to_vmem [thread:$0]  %s3, 256, %s62, [#allocation9], 64, 64, 4
    $region17: #{tpu_custom_call.1} parent=1 // pred_fallthru
      _
    // Predicated region
    $region18: #{tpu_custom_call.1} parent=1 // pred_check
      _
    $region19: #{tpu_custom_call.1} parent=1 // pred_check_branch
      %69 = sbr.rel (0) target = $region21
    $region20: #{tpu_custom_call.1} parent=1 // pred_region
      _
    $region21: #{tpu_custom_call.1} parent=1 // pred_fallthru
      _
    // Predicated region
    $region22: #{tpu_custom_call.1} parent=1 // pred_check
      _
    $region23: #{tpu_custom_call.1} parent=1 // pred_check_branch
      %71 = sbr.rel (0) target = $region25
    $region24: #{tpu_custom_call.1} parent=1 // pred_region
      _
    $region25: #{tpu_custom_call.1} parent=1 // pred_fallthru
      _
    // Predicated region
    $region26: #{tpu_custom_call.1} parent=1 // pred_check
      _
    $region27: #{tpu_custom_call.1} parent=1 // pred_check_branch
      %73 = sbr.rel (0) target = $region29
    $region28: #{tpu_custom_call.1} parent=1 // pred_region
      _
    $region29: #{tpu_custom_call.1} parent=1 // pred_fallthru
      _
    // Predicated region
    $region30: #{tpu_custom_call.1} parent=1 // pred_check
      _
    $region31: #{tpu_custom_call.1} parent=1 // pred_check_branch
      %75 = sbr.rel (0) target = $region33
    $region32: #{tpu_custom_call.1} parent=1 // pred_region
      %76 = dma.done [#allocation3], 128
    $region33: #{tpu_custom_call.1} parent=1 // pred_fallthru
      _
    // Predicated region
    $region34: #{tpu_custom_call.1} parent=1 // pred_check
      _
    $region35: #{tpu_custom_call.1} parent=1 // pred_check_branch
      %78 = sbr.rel (0) target = $region37
    $region36: #{tpu_custom_call.1} parent=1 // pred_region
      %79 = dma.done [#allocation6], 256
    $region37: #{tpu_custom_call.1} parent=1 // pred_fallthru
      _
    // Predicated region
    $region38: #{tpu_custom_call.1} parent=1 // pred_check
      _
    $region39: #{tpu_custom_call.1} parent=1 // pred_check_branch
      %81 = sbr.rel (0) target = $region41
    $region40: #{tpu_custom_call.1} parent=1 // pred_region
      %82 = dma.done [#allocation6], 256
    $region41: #{tpu_custom_call.1} parent=1 // pred_fallthru
      _
    // Predicated region
    $region42: #{tpu_custom_call.1} parent=1 // pred_check
      _
    $region43: #{tpu_custom_call.1} parent=1 // pred_check_branch
      %84 = sbr.rel (0) target = $region45
    $region44: #{tpu_custom_call.1} parent=1 // pred_region
      %85 = dma.done [#allocation9], 256
    $region45: #{tpu_custom_call.1} parent=1 // pred_fallthru
      _
    %v87 = vld [vmem:[#allocation2] sm:$0xf]
    %v88 = vld [vmem:[#allocation2 + $0x4] sm:$0xf]
    %v89 = vld [vmem:[#allocation5] sm:$0xf]
    %v90 = vld [vmem:[#allocation5 + $0x4] sm:$0xf]
    %v91 = vld [vmem:[#allocation5 + $0x8] sm:$0xf]
    %v92 = vld [vmem:[#allocation5 + $0xc] sm:$0xf]
    %v93 = vld [vmem:[%s4] sm:$0x1]
    %v95 = vlaneseq
    %v96 = vshrl.u32 %v95, 7
    %v97 = vsub.s32 0, %v96
    %v98 = vrot.slane %v93, %v97
    %v102 = vunpack.c.l.b16 %v87
    %v103 = vunpack.c.l.b16 %v88
    %v104 = vpack.c.b16 %v103, %v102
    %v109 = vunpack.c.l.b16 %v89
    %v110 = vunpack.c.l.b16 %v90
    %v111 = vunpack.c.l.b16 %v91
    %v112 = vunpack.c.l.b16 %v92
    %v113 = vpack.c.b16 %v110, %v109
    %v114 = vpack.c.b16 %v112, %v111
    %vm117 = vcmask 261120
    %v119 = vsel %vm117, %v104, 0
    %121 = vmatprep.subr.bf16.mxu0 0
    %122 = vmatpush1.bf16.msra.mxu0 %v113
    %123 = vmatprep.subr.bf16.mxu0 0
    %124 = vmatpush1.bf16.msra.mxu0 %v114
    %125 = vmatprep.subr.bf16.mxu0 0
    %126 = vmatpush1.bf16.msra.mxu0 0
    %127 = vmatprep.subr.bf16.mxu0 0
    %128 = vmatpush1.bf16.msra.mxu0 0
    %129 = vmatprep.subr.bf16.mxu0 0
    %130 = vmatpush1.bf16.msra.mxu0 0
    %131 = vmatprep.subr.bf16.mxu0 0
    %132 = vmatpush1.bf16.msra.mxu0 0
    %133 = vmatprep.subr.bf16.mxu0 0
    %134 = vmatpush1.bf16.msra.mxu0 0
    %135 = vmatprep.subr.bf16.mxu0 0
    %136 = vmatpush1.bf16.msra.mxu0 0
    %137 = vmatprep.subr.bf16.mxu0 0
    %138 = vmatpush1.bf16.msra.mxu0 0
    %139 = vmatprep.subr.bf16.mxu0 0
    %140 = vmatpush1.bf16.msra.mxu0 0
    %141 = vmatprep.subr.bf16.mxu0 0
    %142 = vmatpush1.bf16.msra.mxu0 0
    %143 = vmatprep.subr.bf16.mxu0 0
    %144 = vmatpush1.bf16.msra.mxu0 0
    %145 = vmatprep.subr.bf16.mxu0 0
    %146 = vmatpush1.bf16.msra.mxu0 0
    %147 = vmatprep.subr.bf16.mxu0 0
    %148 = vmatpush1.bf16.msra.mxu0 0
    %149 = vmatprep.subr.bf16.mxu0 0
    %150 = vmatpush1.bf16.msra.mxu0 0
    %151 = vmatprep.subr.bf16.mxu0 0
    %152 = vmatpush1.bf16.msra.mxu0 0
    %153 = vmatprep.mubr.bf16.mxu0 0
    %154 = vmatmul.mubr.bf16.gmra.mrb[0].mxu0 %v119
    %v155 = vpop.f32.mrb[0].mxu0
    %v156 = vadd.f32 %v98, %v155
    %v157 = vpop.f32.mrb[0].mxu0
    %v158 = vpop.f32.mrb[0].mxu0
    %v159 = vadd.f32 %v98, %v158
    %v160 = vpop.f32.mrb[0].mxu0
    %161 = vdwg.mxu0
    %v162 = vpack.c.bf16 %v159, %v156
    %v164 = vunpack.c.l.b16 %v162
    %v165 = vunpack.c.h.b16 %v162
    %v166 = vpack.c.b16 %v164, %v164
    %v167 = vpack.c.b16 %v165, %v165
    %vm170 = vcmask 257024
    %171 = vst.msk [vmem:[#allocation10] sm:$0xf] %vm170, %v166
    %172 = vst.msk [vmem:[#allocation10 + $0x4] sm:$0xf] %vm170, %v167
    %v173 = vld [vmem:[#allocation7] sm:$0xf]
    %v174 = vld [vmem:[#allocation7 + $0x4] sm:$0xf]
    %v175 = vld [vmem:[#allocation7 + $0x8] sm:$0xf]
    %v176 = vld [vmem:[#allocation7 + $0xc] sm:$0xf]
    %v177 = vld [vmem:[%s5] sm:$0x1]
    %v179 = vlaneseq
    %v180 = vshrl.u32 %v179, 7
    %v181 = vsub.s32 0, %v180
    %v182 = vrot.slane %v177, %v181
    %v188 = vunpack.c.l.b16 %v173
    %v189 = vunpack.c.l.b16 %v174
    %v190 = vunpack.c.l.b16 %v175
    %v191 = vunpack.c.l.b16 %v176
    %v192 = vpack.c.b16 %v189, %v188
    %v193 = vpack.c.b16 %v191, %v190
    %196 = vmatprep.subr.bf16.mxu0 0
    %197 = vmatpush1.bf16.msra.mxu0 %v192
    %198 = vmatprep.subr.bf16.mxu0 0
    %199 = vmatpush1.bf16.msra.mxu0 %v193
    %200 = vmatprep.subr.bf16.mxu0 0
    %201 = vmatpush1.bf16.msra.mxu0 0
    %202 = vmatprep.subr.bf16.mxu0 0
    %203 = vmatpush1.bf16.msra.mxu0 0
    %204 = vmatprep.subr.bf16.mxu0 0
    %205 = vmatpush1.bf16.msra.mxu0 0
    %206 = vmatprep.subr.bf16.mxu0 0
    %207 = vmatpush1.bf16.msra.mxu0 0
    %208 = vmatprep.subr.bf16.mxu0 0
    %209 = vmatpush1.bf16.msra.mxu0 0
    %210 = vmatprep.subr.bf16.mxu0 0
    %211 = vmatpush1.bf16.msra.mxu0 0
    %212 = vmatprep.subr.bf16.mxu0 0
    %213 = vmatpush1.bf16.msra.mxu0 0
    %214 = vmatprep.subr.bf16.mxu0 0
    %215 = vmatpush1.bf16.msra.mxu0 0
    %216 = vmatprep.subr.bf16.mxu0 0
    %217 = vmatpush1.bf16.msra.mxu0 0
    %218 = vmatprep.subr.bf16.mxu0 0
    %219 = vmatpush1.bf16.msra.mxu0 0
    %220 = vmatprep.subr.bf16.mxu0 0
    %221 = vmatpush1.bf16.msra.mxu0 0
    %222 = vmatprep.subr.bf16.mxu0 0
    %223 = vmatpush1.bf16.msra.mxu0 0
    %224 = vmatprep.subr.bf16.mxu0 0
    %225 = vmatpush1.bf16.msra.mxu0 0
    %226 = vmatprep.subr.bf16.mxu0 0
    %227 = vmatpush1.bf16.msra.mxu0 0
    %228 = vmatprep.mubr.bf16.mxu0 0
    %229 = vmatmul.mubr.bf16.gmra.mrb[0].mxu0 %v119
    %v230 = vpop.f32.mrb[0].mxu0
    %v231 = vadd.f32 %v182, %v230
    %v232 = vpop.f32.mrb[0].mxu0
    %v233 = vpop.f32.mrb[0].mxu0
    %v234 = vadd.f32 %v182, %v233
    %v235 = vpop.f32.mrb[0].mxu0
    %236 = vdwg.mxu0
    %v237 = vpack.c.bf16 %v234, %v231
    %v239 = vunpack.c.l.b16 %v237
    %v240 = vunpack.c.h.b16 %v237
    %v241 = vpack.c.b16 %v239, %v239
    %v242 = vpack.c.b16 %v240, %v240
    %245 = vst.msk [vmem:[#allocation11] sm:$0xf] %vm170, %v241
    %246 = vst.msk [vmem:[#allocation11 + $0x4] sm:$0xf] %vm170, %v242
    %v247 = vld [vmem:[#allocation8] sm:$0xf]
    %v248 = vld [vmem:[#allocation8 + $0x4] sm:$0xf]
    %v249 = vld [vmem:[#allocation8 + $0x8] sm:$0xf]
    %v250 = vld [vmem:[#allocation8 + $0xc] sm:$0xf]
    %v251 = vld [vmem:[%s6] sm:$0x1]
    %v253 = vlaneseq
    %v254 = vshrl.u32 %v253, 7
    %v255 = vsub.s32 0, %v254
    %v256 = vrot.slane %v251, %v255
    %v262 = vunpack.c.l.b16 %v247
    %v263 = vunpack.c.l.b16 %v248
    %v264 = vunpack.c.l.b16 %v249
    %v265 = vunpack.c.l.b16 %v250
    %v266 = vpack.c.b16 %v263, %v262
    %v267 = vpack.c.b16 %v265, %v264
    %270 = vmatprep.subr.bf16.mxu0 0
    %271 = vmatpush1.bf16.msra.mxu0 %v266
    %272 = vmatprep.subr.bf16.mxu0 0
    %273 = vmatpush1.bf16.msra.mxu0 %v267
    %274 = vmatprep.subr.bf16.mxu0 0
    %275 = vmatpush1.bf16.msra.mxu0 0
    %276 = vmatprep.subr.bf16.mxu0 0
    %277 = vmatpush1.bf16.msra.mxu0 0
    %278 = vmatprep.subr.bf16.mxu0 0
    %279 = vmatpush1.bf16.msra.mxu0 0
    %280 = vmatprep.subr.bf16.mxu0 0
    %281 = vmatpush1.bf16.msra.mxu0 0
    %282 = vmatprep.subr.bf16.mxu0 0
    %283 = vmatpush1.bf16.msra.mxu0 0
    %284 = vmatprep.subr.bf16.mxu0 0
    %285 = vmatpush1.bf16.msra.mxu0 0
    %286 = vmatprep.subr.bf16.mxu0 0
    %287 = vmatpush1.bf16.msra.mxu0 0
    %288 = vmatprep.subr.bf16.mxu0 0
    %289 = vmatpush1.bf16.msra.mxu0 0
    %290 = vmatprep.subr.bf16.mxu0 0
    %291 = vmatpush1.bf16.msra.mxu0 0
    %292 = vmatprep.subr.bf16.mxu0 0
    %293 = vmatpush1.bf16.msra.mxu0 0
    %294 = vmatprep.subr.bf16.mxu0 0
    %295 = vmatpush1.bf16.msra.mxu0 0
    %296 = vmatprep.subr.bf16.mxu0 0
    %297 = vmatpush1.bf16.msra.mxu0 0
    %298 = vmatprep.subr.bf16.mxu0 0
    %299 = vmatpush1.bf16.msra.mxu0 0
    %300 = vmatprep.subr.bf16.mxu0 0
    %301 = vmatpush1.bf16.msra.mxu0 0
    %302 = vmatprep.mubr.bf16.mxu0 0
    %303 = vmatmul.mubr.bf16.gmra.mrb[0].mxu0 %v119
    %v304 = vpop.f32.mrb[0].mxu0
    %v305 = vadd.f32 %v256, %v304
    %v306 = vpop.f32.mrb[0].mxu0
    %v307 = vpop.f32.mrb[0].mxu0
    %v308 = vadd.f32 %v256, %v307
    %v309 = vpop.f32.mrb[0].mxu0
    %310 = vdwg.mxu0
    %v311 = vpack.c.bf16 %v308, %v305
    %v313 = vunpack.c.l.b16 %v311
    %v314 = vunpack.c.h.b16 %v311
    %v315 = vpack.c.b16 %v313, %v313
    %v316 = vpack.c.b16 %v314, %v314
    %319 = vst.msk [vmem:[#allocation13] sm:$0xf] %vm170, %v315
    %320 = vst.msk [vmem:[#allocation13 + $0x4] sm:$0xf] %vm170, %v316
    // Predicated region
    $region46: #{tpu_custom_call.1} parent=1 // pred_check
      _
    $region47: #{tpu_custom_call.1} parent=1 // pred_check_branch
      %322 = sbr.rel (0) target = $region49
    $region48: #{tpu_custom_call.1} parent=1 // pred_region
      %s324 = ssub.s32 128, 128
      %325 = vsyncadd [#allocation4], %s324
      %s326 = sshll.u32 [#allocation10], 4
      %s327 = int_to_ptr.vmem [resolvable:$true] %s326
      %332 = dma.vmem_to_hbm [thread:$0]  %s327, 128, %s7, [#allocation4], 64, 64, 4
    $region49: #{tpu_custom_call.1} parent=1 // pred_fallthru
      _
    // Predicated region
    $region50: #{tpu_custom_call.1} parent=1 // pred_check
      _
    $region51: #{tpu_custom_call.1} parent=1 // pred_check_branch
      %334 = sbr.rel (0) target = $region53
    $region52: #{tpu_custom_call.1} parent=1 // pred_region
      %s336 = ssub.s32 128, 128
      %337 = vsyncadd [#allocation12], %s336
      %s338 = sshll.u32 [#allocation11], 4
      %s339 = int_to_ptr.vmem [resolvable:$true] %s338
      %344 = dma.vmem_to_hbm [thread:$0]  %s339, 128, %s8, [#allocation12], 64, 64, 4
    $region53: #{tpu_custom_call.1} parent=1 // pred_fallthru
      _
    // Predicated region
    $region54: #{tpu_custom_call.1} parent=1 // pred_check
      _
    $region55: #{tpu_custom_call.1} parent=1 // pred_check_branch
      %346 = sbr.rel (0) target = $region57
    $region56: #{tpu_custom_call.1} parent=1 // pred_region
      %s348 = ssub.s32 128, 128
      %349 = vsyncadd [#allocation12], %s348
      %s350 = sshll.u32 [#allocation13], 4
      %s351 = int_to_ptr.vmem [resolvable:$true] %s350
      %356 = dma.vmem_to_hbm [thread:$0]  %s351, 128, %s9, [#allocation12], 64, 64, 4
    $region57: #{tpu_custom_call.1} parent=1 // pred_fallthru
      _
    // Predicated region
    $region58: #{tpu_custom_call.1} parent=1 // pred_check
      _
    $region59: #{tpu_custom_call.1} parent=1 // pred_check_branch
      %358 = sbr.rel (0) target = $region61
    $region60: #{tpu_custom_call.1} parent=1 // pred_region
      %359 = dma.done [#allocation4], 128
    $region61: #{tpu_custom_call.1} parent=1 // pred_fallthru
      _
    // Predicated region
    $region62: #{tpu_custom_call.1} parent=1 // pred_check
      _
    $region63: #{tpu_custom_call.1} parent=1 // pred_check_branch
      %361 = sbr.rel (0) target = $region65
    $region64: #{tpu_custom_call.1} parent=1 // pred_region
      %362 = dma.done [#allocation12], 128
    $region65: #{tpu_custom_call.1} parent=1 // pred_fallthru
      _
    // Predicated region
    $region66: #{tpu_custom_call.1} parent=1 // pred_check
      _
    $region67: #{tpu_custom_call.1} parent=1 // pred_check_branch
      %364 = sbr.rel (0) target = $region69
    $region68: #{tpu_custom_call.1} parent=1 // pred_region
      %365 = dma.done [#allocation12], 128
    $region69: #{tpu_custom_call.1} parent=1 // pred_fallthru
      _
    %366 = vsyncpa [#allocation3], 1
    %367 = vsyncpa [#allocation6], 1
    %368 = vsyncpa [#allocation9], 1
    %369 = vsyncpa [#allocation4], 1
    %370 = vsyncpa [#allocation12], 1

</llo_original>
